<compile_context>
chip_gen: v6e
topology: v6e:2x2x1
jax: 0.10.0
libtpu: 0.0.40
codegen_flags: <defaults>
</compile_context>

<pallas_src>
import numpy as np
import jax
import jax.numpy as jnp
from jax.experimental import pallas as pl
from jax.experimental.pallas import tpu as pltpu


def _round_up(x, m):
    return (x + m - 1) // m * m


# ---------------------------------------------------------------------------
# Path 1: in_dim == out_dim == 1  ->  y = x * w + b on the VPU (no MXU).
# ---------------------------------------------------------------------------
def _scalar_linear_kernel(x_ref, w_ref, b_ref, o_ref):
    # x_ref: (1, N) VMEM (batch on the lane axis); w_ref/b_ref: (1, 1) SMEM.
    w = w_ref[0, 0]
    b = b_ref[0, 0]
    o_ref[...] = x_ref[...] * w + b


def _linear_forward_scalar(x, w, b):
    n = x.shape[0]
    x_row = x.reshape(1, n)  # lane-dense presentation (wrapper-side reshape is free)
    y_row = pl.pallas_call(
        _scalar_linear_kernel,
        out_shape=jax.ShapeDtypeStruct((1, n), x.dtype),
        in_specs=[
            pl.BlockSpec(memory_space=pltpu.MemorySpace.VMEM),
            pl.BlockSpec(memory_space=pltpu.MemorySpace.SMEM),
            pl.BlockSpec(memory_space=pltpu.MemorySpace.SMEM),
        ],
        out_specs=pl.BlockSpec(memory_space=pltpu.MemorySpace.VMEM),
    )(x_row, w.reshape(1, 1).astype(x.dtype), b.reshape(1, 1).astype(x.dtype))
    return y_row.reshape(n, 1)


# ---------------------------------------------------------------------------
# Path 2: general tiled  y = x @ W.T + b  (W pre-transposed in the wrapper).
# ---------------------------------------------------------------------------
def _tiled_linear_kernel(x_ref, wt_ref, b_ref, o_ref, acc_ref):
    k = pl.program_id(2)

    @pl.when(k == 0)
    def _():
        acc_ref[...] = jnp.zeros_like(acc_ref)

    # wt_ref is already (K, N): contraction on the last axis of x, no in-kernel
    # transpose, result accumulates in f32.
    acc_ref[...] += jnp.dot(
        x_ref[...], wt_ref[...], preferred_element_type=jnp.float32
    )

    @pl.when(k == pl.num_programs(2) - 1)
    def _():
        o_ref[...] = (acc_ref[...] + b_ref[...].astype(jnp.float32)).astype(o_ref.dtype)


def _linear_forward_tiled(x, w, b, *, tm=256, tn=256, tk=256):
    m, kdim = x.shape
    n = w.shape[0]

    wt = w.T                      # (K, N) — wrapper-side layout plumbing, not kernel cycles
    b2d = b.reshape(1, n)

    # Clamp tiles to (padded) problem size; keep (8, 128) alignment.
    tm = min(tm, _round_up(m, 8))
    tn = min(tn, _round_up(n, 128))
    tk = min(tk, _round_up(kdim, 128))
    # NOTE: 256-tiles (f32) use ~2 MiB double-buffered -> fits default scoped VMEM
    # on v5e/v6e/v7x.  For much larger tiles on v7x, re-budget against 64 MiB and
    # set pltpu.CompilerParams(vmem_limit_bytes=...).

    mp, kp, np_ = _round_up(m, tm), _round_up(kdim, tk), _round_up(n, tn)
    if (mp, kp) != (m, kdim):
        x = jnp.pad(x, ((0, mp - m), (0, kp - kdim)))
    if (kp, np_) != (kdim, n):
        wt = jnp.pad(wt, ((0, kp - kdim), (0, np_ - n)))
    if np_ != n:
        b2d = jnp.pad(b2d, ((0, 0), (0, np_ - n)))

    grid = (mp // tm, np_ // tn, kp // tk)

    out = pl.pallas_call(
        _tiled_linear_kernel,
        out_shape=jax.ShapeDtypeStruct((mp, np_), x.dtype),
        grid_spec=pltpu.PrefetchScalarGridSpec(
            num_scalar_prefetch=0,
            grid=grid,
            in_specs=[
                pl.BlockSpec((tm, tk), lambda i, j, k: (i, k)),
                pl.BlockSpec((tk, tn), lambda i, j, k: (k, j)),
                pl.BlockSpec((1, tn), lambda i, j, k: (0, j)),
            ],
            out_specs=pl.BlockSpec((tm, tn), lambda i, j, k: (i, j)),
            scratch_shapes=[pltpu.VMEM((tm, tn), jnp.float32)],
        ),
        compiler_params=pltpu.CompilerParams(
            dimension_semantics=("parallel", "parallel", "arbitrary"),
        ),
    )(x, wt, b2d)
    return out[:m, :n]


def linear_forward(x, w, b, **tile_kwargs):
    """Pallas equivalent of torch.nn.Linear forward: y = x @ w.T + b."""
    out_dim, in_dim = w.shape
    if in_dim == 1 and out_dim == 1:
        return _linear_forward_scalar(x, w, b)
    return _linear_forward_tiled(x, w, b, **tile_kwargs)


if __name__ == "__main__":
    # --- The module's configuration: LinearRegression(1, 1), x = [[1],[2],[3],[4]] ---
    input_dim, output_dim = 1, 1

    key = jax.random.PRNGKey(0)
    kw, kb = jax.random.split(key)
    bound = 1.0 / float(np.sqrt(input_dim))  # nn.Linear init range U(-1/sqrt(in), 1/sqrt(in))
    w = jax.random.uniform(kw, (output_dim, input_dim), jnp.float32, -bound, bound)
    b = jax.random.uniform(kb, (output_dim,), jnp.float32, -bound, bound)

    x = jnp.array([[1.0], [2.0], [3.0], [4.0]], dtype=jnp.float32)

    y = linear_forward(x, w, b)
    jax.block_until_ready(y)

    y_ref = x @ w.T + b
    assert y.shape == (4, output_dim)
    assert jnp.allclose(y, y_ref, atol=1e-6), (y, y_ref)

    # --- Exercise the general tiled path (multi-tile grid, K-accumulation, padding) ---
    kx2, kw2, kb2 = jax.random.split(jax.random.PRNGKey(1), 3)
    M2, K2, N2 = 300, 200, 130  # deliberately not tile-aligned
    x2 = jax.random.normal(kx2, (M2, K2), jnp.float32)
    w2 = jax.random.normal(kw2, (N2, K2), jnp.float32)
    b2 = jax.random.normal(kb2, (N2,), jnp.float32)

    y2 = linear_forward(x2, w2, b2, tm=128, tn=128, tk=128)  # grid = (3, 2, 2)
    jax.block_until_ready(y2)

    y2_ref = np.asarray(x2, np.float64) @ np.asarray(w2, np.float64).T + np.asarray(
        b2, np.float64
    )
    assert y2.shape == (M2, N2)
    assert np.allclose(np.asarray(y2, np.float64), y2_ref, atol=5e-3, rtol=5e-3)

    print("KERNEL_OK")
</pallas_src>

<mosaic_0001>
module attributes {stable_mosaic.version = 11 : i64} {
  func.func @_scalar_linear_kernel(%arg0: memref<1x4xf32, #tpu.memory_space<vmem>>, %arg1: memref<1x1xf32, #tpu.memory_space<smem>>, %arg2: memref<1x1xf32, #tpu.memory_space<smem>>, %arg3: memref<1x4xf32, #tpu.memory_space<vmem>>) attributes {dimension_semantics = [], scalar_prefetch = 0 : i64, scratch_operands = 0 : i64, tpu.core_type = #tpu.core_type<tc>} {
    %c0 = arith.constant 0 : index
    %c0_0 = arith.constant 0 : index
    %0 = memref.load %arg1[%c0, %c0_0] : memref<1x1xf32, #tpu.memory_space<smem>>
    %c0_1 = arith.constant 0 : index
    %c0_2 = arith.constant 0 : index
    %1 = memref.load %arg2[%c0_1, %c0_2] : memref<1x1xf32, #tpu.memory_space<smem>>
    %c0_3 = arith.constant 0 : index
    %c0_4 = arith.constant 0 : index
    %2 = vector.load %arg0[%c0_3, %c0_4] : memref<1x4xf32, #tpu.memory_space<vmem>>, vector<1x4xf32>
    %3 = vector.broadcast %0 : f32 to vector<1x4xf32>
    %4 = arith.mulf %2, %3 : vector<1x4xf32>
    %5 = vector.broadcast %1 : f32 to vector<1x4xf32>
    %6 = arith.addf %4, %5 : vector<1x4xf32>
    %c0_5 = arith.constant 0 : index
    %c0_6 = arith.constant 0 : index
    %7 = vector.load %arg3[%c0_5, %c0_6] : memref<1x4xf32, #tpu.memory_space<vmem>>, vector<1x4xf32>
    tpu.vector_store %arg3[%c0_5, %c0_6], %6 {strides = array<i32>} : memref<1x4xf32, #tpu.memory_space<vmem>>, vector<1x4xf32>,
    return
  }
}

</mosaic_0001>

<llo_original>
// kernel: tpu_custom_call.1
$region0: #{tpu_custom_call.1}
  #allocation0 [shape = 'u32[]', space=smem, size = 0x4, offset = 0x4, fixed_abs, tag = 'smem constant byte address 0x4 - core index']
  #allocation1 [shape = 'u32[144,128]{1,0:T(1,128)}', space=vmem, size = 0x12000, scoped, tag = 'internal scratch']
  #allocation2 [shape = 'f32[1,1]{1,0:T(1,128)S(6)}', space=smem, size = 0x200, scoped, tag = 'scoped memory for tpu_custom_call.1']
  #allocation3 [shape = 'f32[1,1]{1,0:T(1,128)S(6)}', space=smem, size = 0x200, scoped, tag = 'scoped memory for tpu_custom_call.1']
  %s0 = inlined_call_operand.vmem [shape: f32[1,4], index: 0, kind: input, shape index: {}]
  %s1 = inlined_call_operand.<no memory space> [shape: f32[1,1], index: 1, kind: input, shape index: {}]
  %s2 = inlined_call_operand.<no memory space> [shape: f32[1,1], index: 2, kind: input, shape index: {}]
  %s3 = inlined_call_operand.hbm [shape: f32[1,4], index: 3, kind: output, shape index: {}]
  %s4 = sld [smem:[#allocation0]]
  $region22: #{tpu_custom_call.1} parent=0
    _
  %s6 = ssub.s32 1, %s4
  %s7 = scalar_select 0, %s6, %s4
  %8 = sst [smem:[#allocation2]] %s1
  %9 = sst [smem:[#allocation3]] %s2
  $region1: #{tpu_custom_call.1} parent=0
    #allocation4 [shape = 'u8[512]{0}', space=vmem, size = 0x400, scoped, tag = 'output window, operand 0, single buffered']
    #allocation5 [shape = 's32[1]{0}', space=sflag, size = 0x4, scoped, tag = 'scoped memory for tpu_custom_call.1']
    %10 = vsyncpa [#allocation5], 0
    // Predicated region
    $region2: #{tpu_custom_call.1} parent=1 // pred_check
      _
    $region3: #{tpu_custom_call.1} parent=1 // pred_check_branch
      %12 = sbr.rel (0) target = $region5
    $region4: #{tpu_custom_call.1} parent=1 // pred_region
      _
    $region5: #{tpu_custom_call.1} parent=1 // pred_fallthru
      _
    // Predicated region
    $region6: #{tpu_custom_call.1} parent=1 // pred_check
      _
    $region7: #{tpu_custom_call.1} parent=1 // pred_check_branch
      %14 = sbr.rel (0) target = $region9
    $region8: #{tpu_custom_call.1} parent=1 // pred_region
      _
    $region9: #{tpu_custom_call.1} parent=1 // pred_fallthru
      _
    // Predicated region
    $region10: #{tpu_custom_call.1} parent=1 // pred_check
      _
    $region11: #{tpu_custom_call.1} parent=1 // pred_check_branch
      %16 = sbr.rel (0) target = $region13
    $region12: #{tpu_custom_call.1} parent=1 // pred_region
      _
    $region13: #{tpu_custom_call.1} parent=1 // pred_fallthru
      _
    %s17 = sld [smem:[#allocation2]]
    %s18 = sld [smem:[#allocation3]]
    %v19 = vld [vmem:[%s0] sm:$0x1]
    %v20 = vstv %s17
    %v21 = vmul.f32 %v19, %v20
    %v22 = vstv %s18
    %v23 = vadd.f32 %v21, %v22
    %vm24 = vcmask 24576
    %25 = vst.msk [vmem:[#allocation4] sm:$0x1] %vm24, %v23
    // Predicated region
    $region14: #{tpu_custom_call.1} parent=1 // pred_check
      _
    $region15: #{tpu_custom_call.1} parent=1 // pred_check_branch
      %27 = sbr.rel (0) target = $region17
    $region16: #{tpu_custom_call.1} parent=1 // pred_region
      %s29 = ssub.s32 16, 16
      %30 = vsyncadd [#allocation5], %s29
      %s32 = sshll.u32 [#allocation4], 4
      %s33 = int_to_ptr.vmem [resolvable:$true] %s32
      %35 = dma.vmem_to_hbm [thread:$0]  %s33, 16, %s3, [#allocation5]
    $region17: #{tpu_custom_call.1} parent=1 // pred_fallthru
      _
    // Predicated region
    $region18: #{tpu_custom_call.1} parent=1 // pred_check
      _
    $region19: #{tpu_custom_call.1} parent=1 // pred_check_branch
      %37 = sbr.rel (0) target = $region21
    $region20: #{tpu_custom_call.1} parent=1 // pred_region
      %38 = dma.done [#allocation5], 16
    $region21: #{tpu_custom_call.1} parent=1 // pred_fallthru
      _
    %39 = vsyncpa [#allocation5], 1

</llo_original>
